<compile_context>
chip_gen: v7x
topology: tpu7x:2x2x1
jax: 0.10.0
libtpu: 0.0.40
codegen_flags: <defaults>
</compile_context>

<pallas_src>
import functools

import jax
import jax.numpy as jnp
from jax.experimental import pallas as pl
from jax.experimental.pallas import tpu as pltpu


def _bilinear_matrix(out_size, in_size, dtype=jnp.float32):
    """Interpolation matrix (out_size, in_size) for bilinear, align_corners=True."""
    if out_size == 1:
        return jnp.zeros((1, in_size), dtype).at[0, 0].set(1.0)
    o = jnp.arange(out_size, dtype=jnp.float32)
    src = o * (in_size - 1) / (out_size - 1)
    lo = jnp.clip(jnp.floor(src).astype(jnp.int32), 0, in_size - 1)
    hi = jnp.clip(lo + 1, 0, in_size - 1)
    frac = src - lo.astype(jnp.float32)
    rows = jnp.arange(out_size)
    w = jnp.zeros((out_size, in_size), dtype)
    w = w.at[rows, lo].add(1.0 - frac)
    w = w.at[rows, hi].add(frac)
    return w


def _interp_operator(input_size, hl, wl, dtype=jnp.bfloat16):
    """Fused Kronecker operator: up[n,c].ravel() = label[n,c].ravel() @ w_kron."""
    wr = _bilinear_matrix(input_size, hl)                 # (S, Hl)
    wc = _bilinear_matrix(input_size, wl)                 # (S, Wl)
    return jnp.kron(wr.T, wc.T).astype(dtype)             # (Hl*Wl, S*S)


def _lexp_kernel(exp_ref, label_ref, x_ref, w_ref, out_ref, *,
                 classes_num, block_batch, total_n, inv_cx, n_subchains):
    C = classes_num
    B = block_batch
    SS = w_ref.shape[-1]

    # (a) Single stacked MXU matmul for all classes of all block_batch batch
    #     elements: (C*B, Hl*Wl) @ (Hl*Wl, S*S), bf16 operands, f32 accumulate.
    lb = label_ref[...].astype(w_ref.dtype)                       # (C*B, HWl)
    up = jnp.dot(lb, w_ref[...], preferred_element_type=jnp.float32)  # (C*B, SS)

    # Hoisted SMEM scalar reads of the exposure table.
    exp_vals = [exp_ref[c] for c in range(C)]

    # (b) Running argmax over classes fused with the exposure lookup,
    #     vectorized over the within-block batch axis.  Strict `>` keeps the
    #     first occurrence (matches jnp.argmax / the torch assignment loop).
    def run_chain(lo, hi):
        rmax = up[lo * B:(lo + 1) * B]                            # (B, SS)
        rexp = jnp.zeros((B, SS), jnp.float32) + exp_vals[lo]     # one broadcast
        for c in range(lo + 1, hi):
            uc = up[c * B:(c + 1) * B]
            take = uc > rmax
            rexp = jnp.where(take, exp_vals[c], rexp)
            rmax = jnp.where(take, uc, rmax)
        return rmax, rexp

    # Split the serial chain into independent sub-chains for VALU ILP; merge
    # left-to-right with strict `>` so the lower class index wins ties.
    n_sub = max(1, min(n_subchains, C))
    bounds = [(i * C) // n_sub for i in range(n_sub + 1)]
    chains = [run_chain(bounds[i], bounds[i + 1]) for i in range(n_sub)]
    rmax, rexp = chains[0]
    for m2, e2 in chains[1:]:
        take = m2 > rmax
        rexp = jnp.where(take, e2, rexp)
        rmax = jnp.where(take, m2, rmax)

    # (c) Channel mean of x: channel-major block layout (Cx, B, SS) -> the
    #     reduction over the leading axis is elementwise adds and the result
    #     is already a sublane-dense (B, SS) tile.  Multiply by 1/Cx constant.
    x_mean = jnp.sum(x_ref[...].astype(jnp.float32), axis=0) * inv_cx  # (B, SS)

    # (d) Squared error; mask the zero-padded tail rows of the last block.
    diff = x_mean - rexp
    sq = diff * diff
    if total_n % B != 0:                                   # static, only if a tail exists
        valid = total_n - pl.program_id(0) * B
        row = jax.lax.broadcasted_iota(jnp.int32, (B, SS), 0)
        sq = jnp.where(row < valid, sq, 0.0)

    # Lane-dense per-step partial sum (summed / normalized outside the kernel).
    out_ref[...] = jnp.sum(sq) * jnp.ones(out_ref.shape, jnp.float32)


def l_exp_classes(x, label, classes_exposure, input_size, block_batch=None,
                  interp_dtype=jnp.bfloat16):
    """Pallas implementation of L_exp_classes.forward (pool_flag=False)."""
    N, Cx, Hx, Wx = x.shape
    Nl, C, Hl, Wl = label.shape
    assert N == Nl and (Hx, Wx) == (input_size, input_size)
    classes_num = classes_exposure.shape[0]
    assert C == classes_num
    S = input_size
    SS = S * S
    HWl = Hl * Wl

    # Batch elements per grid step: big enough to amortize per-step overhead
    # and fill the MXU (M = C*block_batch), small enough that G >= 2 so the
    # v7x second TensorCore gets work via the "parallel" grid axis.  Prefer
    # multiples of 8 (sublane-aligned per-class slices of the stacked matmul).
    if block_batch is None:
        block_batch = max(1, min(32, N // 2))
        if block_batch >= 8:
            block_batch = (block_batch // 8) * 8
    G = -(-N // block_batch)                 # cdiv: no divisor-of-N requirement
    N_pad = G * block_batch

    # Fused interpolation operator (bf16 -> native MXU pass on every gen).
    w_kron = _interp_operator(S, Hl, Wl, interp_dtype)     # (HWl, SS)

    inv_total = 1.0 / float(N * SS)          # torch.mean over (N, 1, S, S)

    # Lane-dense, block-friendly layouts (one extra HBM pass done by XLA):
    #   label -> (G, C*block_batch, HWl)   class-major, batch second-minor
    #   x     -> (G, Cx, block_batch, SS)  channel-major within each block
    label_flat = label.reshape(N, C, HWl)
    x_flat = x.reshape(N, Cx, SS)
    if N_pad != N:
        pad = N_pad - N
        label_flat = jnp.pad(label_flat, ((0, pad), (0, 0), (0, 0)))
        x_flat = jnp.pad(x_flat, ((0, pad), (0, 0), (0, 0)))
    label_blk = (label_flat.reshape(G, block_batch, C, HWl)
                 .transpose(0, 2, 1, 3)
                 .reshape(G, C * block_batch, HWl))
    x_blk = x_flat.reshape(G, block_batch, Cx, SS).transpose(0, 2, 1, 3)

    kernel = functools.partial(_lexp_kernel,
                               classes_num=classes_num,
                               block_batch=block_batch,
                               total_n=N,
                               inv_cx=1.0 / float(Cx),
                               n_subchains=4)

    partials = pl.pallas_call(
        kernel,
        out_shape=jax.ShapeDtypeStruct((G, 1, 128), jnp.float32),
        grid_spec=pltpu.PrefetchScalarGridSpec(
            num_scalar_prefetch=0,
            grid=(G,),
            in_specs=[
                # exposure table -> SMEM (scalar reads inside the class chain)
                pl.BlockSpec(memory_space=pltpu.MemorySpace.SMEM),
                # label: (C*block_batch, HWl) block per grid step
                pl.BlockSpec((None, C * block_batch, HWl),
                             lambda g: (g, 0, 0)),
                # x: channel-major (Cx, block_batch, SS) block per grid step
                pl.BlockSpec((None, Cx, block_batch, SS),
                             lambda g: (g, 0, 0, 0)),
                # fused interpolation operator (same block every step -> resident)
                pl.BlockSpec((HWl, SS), lambda g: (0, 0)),
            ],
            out_specs=pl.BlockSpec((1, 1, 128), lambda g: (g, 0, 0)),
        ),
        compiler_params=pltpu.CompilerParams(
            dimension_semantics=("parallel",),
            vmem_limit_bytes=32 * 1024 * 1024),
    )(classes_exposure.astype(jnp.float32), label_blk, x_blk, w_kron)

    return jnp.sum(partials[:, 0, 0]) * inv_total


def l_exp_classes_ref(x, label, classes_exposure, input_size,
                      interp_dtype=jnp.bfloat16):
    """Pure-JAX reference of the PyTorch forward (pool_flag=False)."""
    N, _, _, _ = x.shape
    _, C, Hl, Wl = label.shape
    S = input_size
    w_kron = _interp_operator(S, Hl, Wl, interp_dtype)     # same rounding as kernel
    up = jnp.dot(label.reshape(N * C, Hl * Wl).astype(interp_dtype), w_kron,
                 preferred_element_type=jnp.float32).reshape(N, C, S, S)
    idx = jnp.argmax(up, axis=1)                           # (N, S, S), first occurrence
    mean_val = classes_exposure.astype(jnp.float32)[idx]   # per-pixel exposure lookup
    x_mean = jnp.mean(x.astype(jnp.float32), axis=1)       # (N, S, S)
    return jnp.mean((x_mean - mean_val) ** 2)


if __name__ == "__main__":
    key = jax.random.PRNGKey(0)
    k1, k2 = jax.random.split(key)

    N, Cx, S = 2, 3, 16          # batch, x channels, input_size
    classes_num = 19             # module default
    Hl = Wl = 8                  # label spatial size before upsample

    x = jax.random.uniform(k1, (N, Cx, S, S), dtype=jnp.float32)
    label = jax.random.normal(k2, (N, classes_num, Hl, Wl), dtype=jnp.float32)
    # deterministic stand-in for torch.load('.../exposure_onlyGAN39')
    classes_exposure = jnp.linspace(0.1, 0.9, classes_num, dtype=jnp.float32)

    d = l_exp_classes(x, label, classes_exposure, S)
    d = jax.block_until_ready(d)

    d_ref = l_exp_classes_ref(x, label, classes_exposure, S)
    assert jnp.allclose(d, d_ref, rtol=1e-4, atol=1e-6), (float(d), float(d_ref))

    print("KERNEL_OK")
</pallas_src>

<mosaic_0001>
module attributes {stable_mosaic.version = 11 : i64} {
  func.func @_lexp_kernel(%arg0: i32, %arg1: memref<19xf32, #tpu.memory_space<smem>>, %arg2: memref<1x19x64xf32, #tpu.memory_space<vmem>>, %arg3: memref<1x3x1x256xf32, #tpu.memory_space<vmem>>, %arg4: memref<64x256xbf16, #tpu.memory_space<vmem>>, %arg5: memref<1x1x128xf32, #tpu.memory_space<vmem>>) attributes {dimension_semantics = [#tpu.dimension_semantics<parallel>], iteration_bounds = array<i64: 2>, scalar_prefetch = 0 : i64, scratch_operands = 0 : i64, tpu.core_type = #tpu.core_type<tc>, window_params = [{transform_indices = @transform_0, window_bounds = array<i64: 19>}, {transform_indices = @transform_1, window_bounds = array<i64: 1, 19, 64>}, {transform_indices = @transform_2, window_bounds = array<i64: 1, 3, 1, 256>}, {pipeline_mode = #tpu.pipeline_mode<synchronous>, transform_indices = @transform_3, window_bounds = array<i64: 64, 256>}, {transform_indices = @transform_4, window_bounds = array<i64: 1, 1, 128>}]} {
    %c0 = arith.constant 0 : index
    %c0_0 = arith.constant 0 : index
    %c0_1 = arith.constant 0 : index
    %0 = vector.load %arg2[%c0, %c0_0, %c0_1] : memref<1x19x64xf32, #tpu.memory_space<vmem>>, vector<1x19x64xf32>
    %1 = vector.shape_cast %0 : vector<1x19x64xf32> to vector<19x64xf32>
    %2 = arith.truncf %1 : vector<19x64xf32> to vector<19x64xbf16>
    %c0_2 = arith.constant 0 : index
    %c0_3 = arith.constant 0 : index
    %3 = vector.load %arg4[%c0_2, %c0_3] : memref<64x256xbf16, #tpu.memory_space<vmem>>, vector<64x256xbf16>
    %cst = arith.constant dense<0.000000e+00> : vector<19x256xf32>
    %4 = tpu.matmul %2, %3, %cst {dimension_numbers = #tpu.dot_dimension_numbers<[1], [0], [0], [1], [0, 0, 1, 1], [], []>} : vector<19x64xbf16>, vector<64x256xbf16>, vector<19x256xf32> -> vector<19x256xf32>
    %c0_4 = arith.constant 0 : index
    %5 = memref.load %arg1[%c0_4] : memref<19xf32, #tpu.memory_space<smem>>
    %c1 = arith.constant 1 : index
    %6 = memref.load %arg1[%c1] : memref<19xf32, #tpu.memory_space<smem>>
    %c2 = arith.constant 2 : index
    %7 = memref.load %arg1[%c2] : memref<19xf32, #tpu.memory_space<smem>>
    %c3 = arith.constant 3 : index
    %8 = memref.load %arg1[%c3] : memref<19xf32, #tpu.memory_space<smem>>
    %c4 = arith.constant 4 : index
    %9 = memref.load %arg1[%c4] : memref<19xf32, #tpu.memory_space<smem>>
    %c5 = arith.constant 5 : index
    %10 = memref.load %arg1[%c5] : memref<19xf32, #tpu.memory_space<smem>>
    %c6 = arith.constant 6 : index
    %11 = memref.load %arg1[%c6] : memref<19xf32, #tpu.memory_space<smem>>
    %c7 = arith.constant 7 : index
    %12 = memref.load %arg1[%c7] : memref<19xf32, #tpu.memory_space<smem>>
    %c8 = arith.constant 8 : index
    %13 = memref.load %arg1[%c8] : memref<19xf32, #tpu.memory_space<smem>>
    %c9 = arith.constant 9 : index
    %14 = memref.load %arg1[%c9] : memref<19xf32, #tpu.memory_space<smem>>
    %c10 = arith.constant 10 : index
    %15 = memref.load %arg1[%c10] : memref<19xf32, #tpu.memory_space<smem>>
    %c11 = arith.constant 11 : index
    %16 = memref.load %arg1[%c11] : memref<19xf32, #tpu.memory_space<smem>>
    %c12 = arith.constant 12 : index
    %17 = memref.load %arg1[%c12] : memref<19xf32, #tpu.memory_space<smem>>
    %c13 = arith.constant 13 : index
    %18 = memref.load %arg1[%c13] : memref<19xf32, #tpu.memory_space<smem>>
    %c14 = arith.constant 14 : index
    %19 = memref.load %arg1[%c14] : memref<19xf32, #tpu.memory_space<smem>>
    %c15 = arith.constant 15 : index
    %20 = memref.load %arg1[%c15] : memref<19xf32, #tpu.memory_space<smem>>
    %c16 = arith.constant 16 : index
    %21 = memref.load %arg1[%c16] : memref<19xf32, #tpu.memory_space<smem>>
    %c17 = arith.constant 17 : index
    %22 = memref.load %arg1[%c17] : memref<19xf32, #tpu.memory_space<smem>>
    %c18 = arith.constant 18 : index
    %23 = memref.load %arg1[%c18] : memref<19xf32, #tpu.memory_space<smem>>
    %24 = vector.extract_strided_slice %4 {offsets = [0, 0], sizes = [1, 256], strides = [1, 1]} : vector<19x256xf32> to vector<1x256xf32>
    %cst_5 = arith.constant 0.000000e+00 : f32
    %25 = vector.broadcast %cst_5 : f32 to vector<1x256xf32>
    %26 = vector.broadcast %5 : f32 to vector<1x256xf32>
    %27 = arith.addf %25, %26 : vector<1x256xf32>
    %28 = vector.extract_strided_slice %4 {offsets = [1, 0], sizes = [1, 256], strides = [1, 1]} : vector<19x256xf32> to vector<1x256xf32>
    %29 = arith.cmpf ogt, %28, %24 : vector<1x256xf32>
    %30 = vector.broadcast %6 : f32 to vector<1x256xf32>
    %31 = arith.select %29, %30, %27 : vector<1x256xi1>, vector<1x256xf32>
    %32 = arith.select %29, %28, %24 : vector<1x256xi1>, vector<1x256xf32>
    %33 = vector.extract_strided_slice %4 {offsets = [2, 0], sizes = [1, 256], strides = [1, 1]} : vector<19x256xf32> to vector<1x256xf32>
    %34 = arith.cmpf ogt, %33, %32 : vector<1x256xf32>
    %35 = vector.broadcast %7 : f32 to vector<1x256xf32>
    %36 = arith.select %34, %35, %31 : vector<1x256xi1>, vector<1x256xf32>
    %37 = arith.select %34, %33, %32 : vector<1x256xi1>, vector<1x256xf32>
    %38 = vector.extract_strided_slice %4 {offsets = [3, 0], sizes = [1, 256], strides = [1, 1]} : vector<19x256xf32> to vector<1x256xf32>
    %39 = arith.cmpf ogt, %38, %37 : vector<1x256xf32>
    %40 = vector.broadcast %8 : f32 to vector<1x256xf32>
    %41 = arith.select %39, %40, %36 : vector<1x256xi1>, vector<1x256xf32>
    %42 = arith.select %39, %38, %37 : vector<1x256xi1>, vector<1x256xf32>
    %43 = vector.extract_strided_slice %4 {offsets = [4, 0], sizes = [1, 256], strides = [1, 1]} : vector<19x256xf32> to vector<1x256xf32>
    %cst_6 = arith.constant 0.000000e+00 : f32
    %44 = vector.broadcast %cst_6 : f32 to vector<1x256xf32>
    %45 = vector.broadcast %9 : f32 to vector<1x256xf32>
    %46 = arith.addf %44, %45 : vector<1x256xf32>
    %47 = vector.extract_strided_slice %4 {offsets = [5, 0], sizes = [1, 256], strides = [1, 1]} : vector<19x256xf32> to vector<1x256xf32>
    %48 = arith.cmpf ogt, %47, %43 : vector<1x256xf32>
    %49 = vector.broadcast %10 : f32 to vector<1x256xf32>
    %50 = arith.select %48, %49, %46 : vector<1x256xi1>, vector<1x256xf32>
    %51 = arith.select %48, %47, %43 : vector<1x256xi1>, vector<1x256xf32>
    %52 = vector.extract_strided_slice %4 {offsets = [6, 0], sizes = [1, 256], strides = [1, 1]} : vector<19x256xf32> to vector<1x256xf32>
    %53 = arith.cmpf ogt, %52, %51 : vector<1x256xf32>
    %54 = vector.broadcast %11 : f32 to vector<1x256xf32>
    %55 = arith.select %53, %54, %50 : vector<1x256xi1>, vector<1x256xf32>
    %56 = arith.select %53, %52, %51 : vector<1x256xi1>, vector<1x256xf32>
    %57 = vector.extract_strided_slice %4 {offsets = [7, 0], sizes = [1, 256], strides = [1, 1]} : vector<19x256xf32> to vector<1x256xf32>
    %58 = arith.cmpf ogt, %57, %56 : vector<1x256xf32>
    %59 = vector.broadcast %12 : f32 to vector<1x256xf32>
    %60 = arith.select %58, %59, %55 : vector<1x256xi1>, vector<1x256xf32>
    %61 = arith.select %58, %57, %56 : vector<1x256xi1>, vector<1x256xf32>
    %62 = vector.extract_strided_slice %4 {offsets = [8, 0], sizes = [1, 256], strides = [1, 1]} : vector<19x256xf32> to vector<1x256xf32>
    %63 = arith.cmpf ogt, %62, %61 : vector<1x256xf32>
    %64 = vector.broadcast %13 : f32 to vector<1x256xf32>
    %65 = arith.select %63, %64, %60 : vector<1x256xi1>, vector<1x256xf32>
    %66 = arith.select %63, %62, %61 : vector<1x256xi1>, vector<1x256xf32>
    %67 = vector.extract_strided_slice %4 {offsets = [9, 0], sizes = [1, 256], strides = [1, 1]} : vector<19x256xf32> to vector<1x256xf32>
    %cst_7 = arith.constant 0.000000e+00 : f32
    %68 = vector.broadcast %cst_7 : f32 to vector<1x256xf32>
    %69 = vector.broadcast %14 : f32 to vector<1x256xf32>
    %70 = arith.addf %68, %69 : vector<1x256xf32>
    %71 = vector.extract_strided_slice %4 {offsets = [10, 0], sizes = [1, 256], strides = [1, 1]} : vector<19x256xf32> to vector<1x256xf32>
    %72 = arith.cmpf ogt, %71, %67 : vector<1x256xf32>
    %73 = vector.broadcast %15 : f32 to vector<1x256xf32>
    %74 = arith.select %72, %73, %70 : vector<1x256xi1>, vector<1x256xf32>
    %75 = arith.select %72, %71, %67 : vector<1x256xi1>, vector<1x256xf32>
    %76 = vector.extract_strided_slice %4 {offsets = [11, 0], sizes = [1, 256], strides = [1, 1]} : vector<19x256xf32> to vector<1x256xf32>
    %77 = arith.cmpf ogt, %76, %75 : vector<1x256xf32>
    %78 = vector.broadcast %16 : f32 to vector<1x256xf32>
    %79 = arith.select %77, %78, %74 : vector<1x256xi1>, vector<1x256xf32>
    %80 = arith.select %77, %76, %75 : vector<1x256xi1>, vector<1x256xf32>
    %81 = vector.extract_strided_slice %4 {offsets = [12, 0], sizes = [1, 256], strides = [1, 1]} : vector<19x256xf32> to vector<1x256xf32>
    %82 = arith.cmpf ogt, %81, %80 : vector<1x256xf32>
    %83 = vector.broadcast %17 : f32 to vector<1x256xf32>
    %84 = arith.select %82, %83, %79 : vector<1x256xi1>, vector<1x256xf32>
    %85 = arith.select %82, %81, %80 : vector<1x256xi1>, vector<1x256xf32>
    %86 = vector.extract_strided_slice %4 {offsets = [13, 0], sizes = [1, 256], strides = [1, 1]} : vector<19x256xf32> to vector<1x256xf32>
    %87 = arith.cmpf ogt, %86, %85 : vector<1x256xf32>
    %88 = vector.broadcast %18 : f32 to vector<1x256xf32>
    %89 = arith.select %87, %88, %84 : vector<1x256xi1>, vector<1x256xf32>
    %90 = arith.select %87, %86, %85 : vector<1x256xi1>, vector<1x256xf32>
    %91 = vector.extract_strided_slice %4 {offsets = [14, 0], sizes = [1, 256], strides = [1, 1]} : vector<19x256xf32> to vector<1x256xf32>
    %cst_8 = arith.constant 0.000000e+00 : f32
    %92 = vector.broadcast %cst_8 : f32 to vector<1x256xf32>
    %93 = vector.broadcast %19 : f32 to vector<1x256xf32>
    %94 = arith.addf %92, %93 : vector<1x256xf32>
    %95 = vector.extract_strided_slice %4 {offsets = [15, 0], sizes = [1, 256], strides = [1, 1]} : vector<19x256xf32> to vector<1x256xf32>
    %96 = arith.cmpf ogt, %95, %91 : vector<1x256xf32>
    %97 = vector.broadcast %20 : f32 to vector<1x256xf32>
    %98 = arith.select %96, %97, %94 : vector<1x256xi1>, vector<1x256xf32>
    %99 = arith.select %96, %95, %91 : vector<1x256xi1>, vector<1x256xf32>
    %100 = vector.extract_strided_slice %4 {offsets = [16, 0], sizes = [1, 256], strides = [1, 1]} : vector<19x256xf32> to vector<1x256xf32>
    %101 = arith.cmpf ogt, %100, %99 : vector<1x256xf32>
    %102 = vector.broadcast %21 : f32 to vector<1x256xf32>
    %103 = arith.select %101, %102, %98 : vector<1x256xi1>, vector<1x256xf32>
    %104 = arith.select %101, %100, %99 : vector<1x256xi1>, vector<1x256xf32>
    %105 = vector.extract_strided_slice %4 {offsets = [17, 0], sizes = [1, 256], strides = [1, 1]} : vector<19x256xf32> to vector<1x256xf32>
    %106 = arith.cmpf ogt, %105, %104 : vector<1x256xf32>
    %107 = vector.broadcast %22 : f32 to vector<1x256xf32>
    %108 = arith.select %106, %107, %103 : vector<1x256xi1>, vector<1x256xf32>
    %109 = arith.select %106, %105, %104 : vector<1x256xi1>, vector<1x256xf32>
    %110 = vector.extract_strided_slice %4 {offsets = [18, 0], sizes = [1, 256], strides = [1, 1]} : vector<19x256xf32> to vector<1x256xf32>
    %111 = arith.cmpf ogt, %110, %109 : vector<1x256xf32>
    %112 = vector.broadcast %23 : f32 to vector<1x256xf32>
    %113 = arith.select %111, %112, %108 : vector<1x256xi1>, vector<1x256xf32>
    %114 = arith.select %111, %110, %109 : vector<1x256xi1>, vector<1x256xf32>
    %115 = arith.cmpf ogt, %66, %42 : vector<1x256xf32>
    %116 = arith.select %115, %65, %41 : vector<1x256xi1>, vector<1x256xf32>
    %117 = arith.select %115, %66, %42 : vector<1x256xi1>, vector<1x256xf32>
    %118 = arith.cmpf ogt, %90, %117 : vector<1x256xf32>
    %119 = arith.select %118, %89, %116 : vector<1x256xi1>, vector<1x256xf32>
    %120 = arith.select %118, %90, %117 : vector<1x256xi1>, vector<1x256xf32>
    %121 = arith.cmpf ogt, %114, %120 : vector<1x256xf32>
    %122 = arith.select %121, %113, %119 : vector<1x256xi1>, vector<1x256xf32>
    %c0_9 = arith.constant 0 : index
    %c0_10 = arith.constant 0 : index
    %c0_11 = arith.constant 0 : index
    %c0_12 = arith.constant 0 : index
    %123 = vector.load %arg3[%c0_9, %c0_10, %c0_11, %c0_12] : memref<1x3x1x256xf32, #tpu.memory_space<vmem>>, vector<1x3x1x256xf32>
    %124 = vector.shape_cast %123 : vector<1x3x1x256xf32> to vector<3x1x256xf32>
    %cst_13 = arith.constant dense<0.000000e+00> : vector<1x256xf32>
    %125 = vector.multi_reduction <add>, %124, %cst_13 [0] : vector<3x1x256xf32> to vector<1x256xf32>
    %cst_14 = arith.constant 0.333333343 : f32
    %126 = vector.broadcast %cst_14 : f32 to vector<1x256xf32>
    %127 = arith.mulf %125, %126 : vector<1x256xf32>
    %128 = arith.subf %127, %122 : vector<1x256xf32>
    %129 = arith.mulf %128, %128 : vector<1x256xf32>
    %130 = vector.shape_cast %129 : vector<1x256xf32> to vector<1x1x256xf32>
    %cst_15 = arith.constant dense<0.000000e+00> : vector<1xf32>
    %131 = vector.multi_reduction <add>, %130, %cst_15 [1, 2] : vector<1x1x256xf32> to vector<1xf32>
    %132 = vector.shape_cast %131 : vector<1xf32> to vector<1x1x1xf32>
    %133 = vector.extract %132[0, 0, 0] : f32 from vector<1x1x1xf32>
    %cst_16 = arith.constant 1.000000e+00 : f32
    %134 = vector.broadcast %cst_16 : f32 to vector<1x1x128xf32>
    %135 = vector.broadcast %133 : f32 to vector<1x1x128xf32>
    %136 = arith.mulf %135, %134 : vector<1x1x128xf32>
    %c0_17 = arith.constant 0 : index
    %c0_18 = arith.constant 0 : index
    %c0_19 = arith.constant 0 : index
    %137 = vector.load %arg5[%c0_17, %c0_18, %c0_19] : memref<1x1x128xf32, #tpu.memory_space<vmem>>, vector<1x1x128xf32>
    tpu.vector_store %arg5[%c0_17, %c0_18, %c0_19], %136 {strides = array<i32>} : memref<1x1x128xf32, #tpu.memory_space<vmem>>, vector<1x1x128xf32>,
    return
  }
  func.func @transform_0(%arg0: i32) -> i32 {
    %c0_i32 = arith.constant 0 : i32
    %c0_i32_0 = arith.constant 0 : i32
    return %c0_i32 : i32
  }
  func.func @transform_1(%arg0: i32) -> (i32, i32, i32) {
    %c0_i32 = arith.constant 0 : i32
    %c0_i32_0 = arith.constant 0 : i32
    %c0_i32_1 = arith.constant 0 : i32
    return %arg0, %c0_i32, %c0_i32_0 : i32, i32, i32
  }
  func.func @transform_2(%arg0: i32) -> (i32, i32, i32, i32) {
    %c0_i32 = arith.constant 0 : i32
    %c0_i32_0 = arith.constant 0 : i32
    %c0_i32_1 = arith.constant 0 : i32
    %c0_i32_2 = arith.constant 0 : i32
    return %arg0, %c0_i32, %c0_i32_0, %c0_i32_1 : i32, i32, i32, i32
  }
  func.func @transform_3(%arg0: i32) -> (i32, i32) {
    %c0_i32 = arith.constant 0 : i32
    %c0_i32_0 = arith.constant 0 : i32
    %c0_i32_1 = arith.constant 0 : i32
    return %c0_i32, %c0_i32_0 : i32, i32
  }
  func.func @transform_4(%arg0: i32) -> (i32, i32, i32) {
    %c0_i32 = arith.constant 0 : i32
    %c0_i32_0 = arith.constant 0 : i32
    %c0_i32_1 = arith.constant 0 : i32
    return %arg0, %c0_i32, %c0_i32_0 : i32, i32, i32
  }
}

</mosaic_0001>

<llo_original>
// kernel: tpu_custom_call.1
$region0: #{tpu_custom_call.1}
  #allocation0 [shape = 'u32[]', space=smem, size = 0x4, offset = 0x4, fixed_abs, tag = 'smem constant byte address 0x4 - core index']
  #allocation1 [shape = 'u32[144,128]{1,0:T(1,128)}', space=vmem, size = 0x12000, scoped, tag = 'internal scratch']
  %s0 = inlined_call_operand.vmem [shape: f32[19], index: 0, kind: input, shape index: {}]
  %s1 = inlined_call_operand.vmem [shape: f32[2,19,64], index: 1, kind: input, shape index: {}]
  %s2 = inlined_call_operand.vmem [shape: f32[2,3,1,256], index: 2, kind: input, shape index: {}]
  %s3 = inlined_call_operand.vmem [shape: bf16[64,256], index: 3, kind: input, shape index: {}]
  %s4 = inlined_call_operand.hbm [shape: f32[2,1,128], index: 4, kind: output, shape index: {}]
  %s5 = sld [smem:[#allocation0]]
  $region53: #{tpu_custom_call.1} parent=0
    _
  %s7 = ssub.s32 1, %s5
  %s8 = scalar_select 0, %s7, %s5
  $region1: #{tpu_custom_call.1} parent=0
    #allocation2 [shape = 'u8[512]{0}', space=smem, size = 0x200, scoped, tag = 'input window, operand 0, single buffered']
    #allocation3 [shape = 's32[2]{0}', space=sflag, size = 0x8, scoped, tag = 'scoped memory for tpu_custom_call.1']
    #allocation4 [shape = 's32[2]{0}', space=sflag, size = 0x8, scoped, tag = 'scoped memory for tpu_custom_call.1']
    #allocation5 [shape = 'u8[1024]{0}', space=vmem, size = 0x400, scoped, tag = 'output window, operand 0']
    %9 = vsyncpa [#allocation4], 0
    %10 = vsyncpa [#allocation3], 0
    %s11 = scalar_lea.sflag [#allocation3], 1
    %12 = vsyncpa %s11, 0
    loop: start=0, step=1, limit=4
    $region2: #{tpu_custom_call.1} parent=1 // loop_pre_header
      _
    $region3: #{tpu_custom_call.1} parent=1 // loop_header
      %s14 = sphi 0, %s18
      %p15 = scmp.ge.s32.totalorder %s14, 4
      %s22 = sphi 0, %s22
      %s24 = sphi 0, %s22
      %s25 = sphi 0, %s24
      %s39 = sphi 0, %s25
      %s45 = sphi 0, %s47
      %s48 = sphi 0, %s45
      %s49 = sphi 0, %s48
      %s65 = sphi 0, %s49
      %s71 = sphi 0, %s73
      %s74 = sphi 0, %s71
      %s75 = sphi 0, %s74
      %s91 = sphi 0, %s75
      %s95 = sphi 0, %s95
      %s97 = sphi 0, %s95
      %s98 = sphi 0, %s97
      %s112 = sphi 0, %s98
      %s118 = sphi 0, %s120
      %s121 = sphi 0, %s118
      %s122 = sphi 0, %s121
      %s138 = sphi 0, %s122
    $region4: #{tpu_custom_call.1} parent=1 // loop_header_branch
      %17 = sbr.rel (%p15) target = $region8
    $region5: #{tpu_custom_call.1} parent=1 // loop_body
      %s19 = ssub.s32 %s14, 1
      %s20 = ssub.s32 %s14, 2
      %s21 = sadd.s32 %s14, 1
      %s23 = sadd.s32 %s22, 1
      %p26 = scmp.eq.s32.totalorder %s14, 1
      %p27 = scmp.ne.s32.totalorder %s22, %s24
      %p28 = scmp.eq.s32.totalorder %s14, 0
      %p29 = por %p27, %p28
      %p30 = scmp.ne.s32.totalorder %s22, %s24
      %p31 = scmp.eq.s32.totalorder %s19, 1
      %p32 = por %p30, %p31
      %p33 = scmp.ne.s32.totalorder %s24, %s25
      %p34 = scmp.eq.s32.totalorder %s19, 0
      %p35 = por %p33, %p34
      %p36 = scmp.ne.s32.totalorder %s24, %s25
      %p37 = scmp.eq.s32.totalorder %s20, 1
      %p38 = por %p36, %p37
      %p40 = scmp.ne.s32.totalorder %s25, %s39
      %p41 = scmp.eq.s32.totalorder %s20, 0
      %p42 = por %p40, %p41
      %s43 = ssub.s32 %s14, %s21
      %p44 = scmp.eq.s32.totalorder %s43, 0
      %s46 = sadd.s32 %s45, 1
      %s47 = scalar_select %p44, %s45, %s46
      %p50 = pneg %p44
      %p51 = scmp.eq.s32.totalorder %s14, 1
      %p52 = por %p50, %p51
      %p53 = scmp.ne.s32.totalorder %s45, %s48
      %p54 = scmp.eq.s32.totalorder %s14, 0
      %p55 = por %p53, %p54
      %p56 = scmp.ne.s32.totalorder %s45, %s48
      %p57 = scmp.eq.s32.totalorder %s19, 1
      %p58 = por %p56, %p57
      %p59 = scmp.ne.s32.totalorder %s48, %s49
      %p60 = scmp.eq.s32.totalorder %s19, 0
      %p61 = por %p59, %p60
      %p62 = scmp.ne.s32.totalorder %s48, %s49
      %p63 = scmp.eq.s32.totalorder %s20, 1
      %p64 = por %p62, %p63
      %p66 = scmp.ne.s32.totalorder %s49, %s65
      %p67 = scmp.eq.s32.totalorder %s20, 0
      %p68 = por %p66, %p67
      %s69 = ssub.s32 %s14, %s21
      %p70 = scmp.eq.s32.totalorder %s69, 0
      %s72 = sadd.s32 %s71, 1
      %s73 = scalar_select %p70, %s71, %s72
      %p76 = pneg %p70
      %p77 = scmp.eq.s32.totalorder %s14, 1
      %p78 = por %p76, %p77
      %p79 = scmp.ne.s32.totalorder %s71, %s74
      %p80 = scmp.eq.s32.totalorder %s14, 0
      %p81 = por %p79, %p80
      %p82 = scmp.ne.s32.totalorder %s71, %s74
      %p83 = scmp.eq.s32.totalorder %s19, 1
      %p84 = por %p82, %p83
      %p85 = scmp.ne.s32.totalorder %s74, %s75
      %p86 = scmp.eq.s32.totalorder %s19, 0
      %p87 = por %p85, %p86
      %p88 = scmp.ne.s32.totalorder %s74, %s75
      %p89 = scmp.eq.s32.totalorder %s20, 1
      %p90 = por %p88, %p89
      %p92 = scmp.ne.s32.totalorder %s75, %s91
      %p93 = scmp.eq.s32.totalorder %s20, 0
      %p94 = por %p92, %p93
      %s96 = sadd.s32 %s95, 1
      %p99 = scmp.eq.s32.totalorder %s14, 1
      %p100 = scmp.ne.s32.totalorder %s95, %s97
      %p101 = scmp.eq.s32.totalorder %s14, 0
      %p102 = por %p100, %p101
      %p103 = scmp.ne.s32.totalorder %s95, %s97
      %p104 = scmp.eq.s32.totalorder %s19, 1
      %p105 = por %p103, %p104
      %p106 = scmp.ne.s32.totalorder %s97, %s98
      %p107 = scmp.eq.s32.totalorder %s19, 0
      %p108 = por %p106, %p107
      %p109 = scmp.ne.s32.totalorder %s97, %s98
      %p110 = scmp.eq.s32.totalorder %s20, 1
      %p111 = por %p109, %p110
      %p113 = scmp.ne.s32.totalorder %s98, %s112
      %p114 = scmp.eq.s32.totalorder %s20, 0
      %p115 = por %p113, %p114
      %s116 = ssub.s32 %s14, %s21
      %p117 = scmp.eq.s32.totalorder %s116, 0
      %s119 = sadd.s32 %s118, 1
      %s120 = scalar_select %p117, %s118, %s119
      %p123 = pneg %p117
      %p124 = scmp.eq.s32.totalorder %s14, 1
      %p125 = por %p123, %p124
      %p126 = scmp.ne.s32.totalorder %s118, %s121
      %p127 = scmp.eq.s32.totalorder %s14, 0
      %p128 = por %p126, %p127
      %p129 = scmp.ne.s32.totalorder %s118, %s121
      %p130 = scmp.eq.s32.totalorder %s19, 1
      %p131 = por %p129, %p130
      %p132 = scmp.ne.s32.totalorder %s121, %s122
      %p133 = scmp.eq.s32.totalorder %s19, 0
      %p134 = por %p132, %p133
      %p135 = scmp.ne.s32.totalorder %s121, %s122
      %p136 = scmp.eq.s32.totalorder %s20, 1
      %p137 = por %p135, %p136
      %p139 = scmp.ne.s32.totalorder %s122, %s138
      %p140 = scmp.eq.s32.totalorder %s20, 0
      %p141 = por %p139, %p140
      %p142 = scmp.le.s32.totalorder 1, %s14
      %p143 = scmp.lt.s32.totalorder %s14, 3
      %p144 = pnand %p142, %p143
      %p145 = pneg %p144
      // Predicated region
      $region9: #{tpu_custom_call.1} parent=5 // pred_check
        _
      $region10: #{tpu_custom_call.1} parent=5 // pred_check_branch
        %147 = sbr.rel (%p144) target = $region12
      $region11: #{tpu_custom_call.1} parent=5 // pred_region
        %s148 = ssub.s32 %s14, 1
        // Predicated region
        $region13: #{tpu_custom_call.1} parent=11 // pred_check
          %p149 = pneg %p35
        $region14: #{tpu_custom_call.1} parent=11 // pred_check_branch
          %151 = sbr.rel (%p149) target = $region16
        $region15: #{tpu_custom_call.1} parent=11 // pred_region
          %s153 = ssub.s32 16, 16
          %154 = vsyncadd [#allocation4], %s153
          %s156 = sshll.u32 %s0, 4
          %s157 = int_to_ptr.vmem [resolvable:$true] %s156
          %159 = dma.vmem_to_smem %s157, 16, [#allocation2], [#allocation4]
        $region16: #{tpu_custom_call.1} parent=11 // pred_fallthru
          _
        // Predicated region
        $region17: #{tpu_custom_call.1} parent=11 // pred_check
          %p160 = pneg %p108
        $region18: #{tpu_custom_call.1} parent=11 // pred_check_branch
          %162 = sbr.rel (%p160) target = $region20
        $region19: #{tpu_custom_call.1} parent=11 // pred_region
          _
        $region20: #{tpu_custom_call.1} parent=11 // pred_fallthru
          _
      $region12: #{tpu_custom_call.1} parent=5 // pred_fallthru
        _
      %p163 = scmp.lt.s32.totalorder %s14, 2
      // Predicated region
      $region21: #{tpu_custom_call.1} parent=5 // pred_check
        %p164 = pneg %p163
      $region22: #{tpu_custom_call.1} parent=5 // pred_check_branch
        %166 = sbr.rel (%p164) target = $region24
      $region23: #{tpu_custom_call.1} parent=5 // pred_region
        // Predicated region
        $region25: #{tpu_custom_call.1} parent=23 // pred_check
          %p167 = pneg %p55
        $region26: #{tpu_custom_call.1} parent=23 // pred_check_branch
          %169 = sbr.rel (%p167) target = $region28
        $region27: #{tpu_custom_call.1} parent=23 // pred_region
          %p170 = scmp.lt.s32.totalorder %s14, 1
          %s171 = scalar_select %p170, %s14, 1
          %s172 = smul.addr %s171, 3
          %s173 = smul.addr %s172, 8
          %s174 = scalar_lea.vmem %s1, %s173
        $region28: #{tpu_custom_call.1} parent=23 // pred_fallthru
          _
        // Predicated region
        $region29: #{tpu_custom_call.1} parent=23 // pred_check
          %p175 = pneg %p81
        $region30: #{tpu_custom_call.1} parent=23 // pred_check_branch
          %177 = sbr.rel (%p175) target = $region32
        $region31: #{tpu_custom_call.1} parent=23 // pred_region
          %p178 = scmp.lt.s32.totalorder %s14, 1
          %s179 = scalar_select %p178, %s14, 1
          %s180 = smul.addr %s179, 6
          %s181 = scalar_lea.vmem %s2, %s180
        $region32: #{tpu_custom_call.1} parent=23 // pred_fallthru
          _
      $region24: #{tpu_custom_call.1} parent=5 // pred_fallthru
        _
      %p182 = scmp.le.s32.totalorder 1, %s14
      %p183 = scmp.lt.s32.totalorder %s14, 3
      %p184 = pnand %p182, %p183
      %p185 = pneg %p184
      // Predicated region
      $region33: #{tpu_custom_call.1} parent=5 // pred_check
        _
      $region34: #{tpu_custom_call.1} parent=5 // pred_check_branch
        %187 = sbr.rel (%p184) target = $region36
      $region35: #{tpu_custom_call.1} parent=5 // pred_region
        %s188 = ssub.s32 %s14, 1
        // Predicated region
        $region37: #{tpu_custom_call.1} parent=35 // pred_check
          %p189 = pneg %p35
        $region38: #{tpu_custom_call.1} parent=35 // pred_check_branch
          %191 = sbr.rel (%p189) target = $region40
        $region39: #{tpu_custom_call.1} parent=35 // pred_region
          %192 = dma.done [#allocation4], 16
        $region40: #{tpu_custom_call.1} parent=35 // pred_fallthru
          _
        %193 = sfence
        %p194 = pneg %p35
        %p195 = pneg %p32
        %p196 = scmp.lt.s32.totalorder %s19, 1
        %s197 = scalar_select %p196, %s19, 1
        %s198 = smul.addr %s197, 3
        %s199 = smul.addr %s198, 8
        %s200 = scalar_lea.vmem %s1, %s199
        %p201 = pneg %p61
        %p202 = pneg %p58
        %p203 = scmp.lt.s32.totalorder %s19, 1
        %s204 = scalar_select %p203, %s19, 1
        %s205 = smul.addr %s204, 6
        %s206 = scalar_lea.vmem %s2, %s205
        %p207 = pneg %p87
        %p208 = pneg %p84
        %p209 = pneg %p108
        %p210 = pneg %p105
        %p211 = pneg %p134
        %p212 = pneg %p131
        %s213 = sand.u32 %s121, 1
        %s214 = scalar_lea.sflag [#allocation3], %s213
        %s215 = sand.u32 %s121, 1
        %s216 = scalar_lea.vmem [#allocation5], %s215
        %p217 = scmp.lt.s32.totalorder %s19, 1
        %s218 = scalar_select %p217, %s19, 1
        %s219 = smul.addr %s218, 3
        %s220 = smul.addr %s219, 8
        %s221 = scalar_lea.vmem %s1, %s220
        %p222 = scmp.lt.s32.totalorder %s19, 1
        %s223 = scalar_select %p222, %s19, 1
        %s224 = smul.addr %s223, 6
        %s225 = scalar_lea.vmem %s2, %s224
        %v227 = vld [vmem:[%s221] sm:$0xff]
        %v228 = vld [vmem:[%s221 + $0x8] sm:$0xff]
        %v229 = vld [vmem:[%s221 + $0x10] sm:$0x7]
        %v230 = vpack.c.bf16 %v228, %v227
        %v231 = vpack.c.bf16 %v229, %v229
        %v232 = vld [vmem:[%s3] sm:$0xff]
        %v233 = vld [vmem:[%s3 + $0x8] sm:$0xff]
        %v234 = vld [vmem:[%s3 + $0x10] sm:$0xff]
        %v235 = vld [vmem:[%s3 + $0x18] sm:$0xff]
        %v236 = vld [vmem:[%s3 + $0x20] sm:$0xff]
        %v237 = vld [vmem:[%s3 + $0x28] sm:$0xff]
        %v238 = vld [vmem:[%s3 + $0x30] sm:$0xff]
        %v239 = vld [vmem:[%s3 + $0x38] sm:$0xff]
        %v248 = vunpack.c.l.b16 %v232
        %v249 = vunpack.c.h.b16 %v232
        %v250 = vunpack.c.l.b16 %v233
        %v251 = vunpack.c.h.b16 %v233
        %v252 = vunpack.c.l.b16 %v234
        %v253 = vunpack.c.h.b16 %v234
        %v254 = vunpack.c.l.b16 %v235
        %v255 = vunpack.c.h.b16 %v235
        %v256 = vunpack.c.l.b16 %v236
        %v257 = vunpack.c.h.b16 %v236
        %v258 = vunpack.c.l.b16 %v237
        %v259 = vunpack.c.h.b16 %v237
        %v260 = vunpack.c.l.b16 %v238
        %v261 = vunpack.c.h.b16 %v238
        %v262 = vunpack.c.l.b16 %v239
        %v263 = vunpack.c.h.b16 %v239
        %v264 = vpack.c.b16 %v250, %v248
        %v265 = vpack.c.b16 %v251, %v249
        %v266 = vpack.c.b16 %v254, %v252
        %v267 = vpack.c.b16 %v255, %v253
        %v268 = vpack.c.b16 %v258, %v256
        %v269 = vpack.c.b16 %v259, %v257
        %v270 = vpack.c.b16 %v262, %v260
        %v271 = vpack.c.b16 %v263, %v261
        %vm280 = vcmask 523264
        %v282 = vsel %vm280, %v230, 0
        %v285 = vsel %vm280, %v231, 0
        %287 = vmatprep.subr.bf16.mxu0 %v265
        %288 = vmatpush1.bf16.msra.mxu0 %v264
        %289 = vmatprep.subr.bf16.mxu0 %v267
        %290 = vmatpush1.bf16.msra.mxu0 %v266
        %291 = vmatprep.subr.bf16.mxu0 %v269
        %292 = vmatpush1.bf16.msra.mxu0 %v268
        %293 = vmatprep.subr.bf16.mxu0 %v271
        %294 = vmatpush1.bf16.msra.mxu0 %v270
        %295 = vmatprep.subr.bf16.mxu0 0
        %296 = vmatpush1.bf16.msra.mxu0 0
        %297 = vmatprep.subr.bf16.mxu0 0
        %298 = vmatpush1.bf16.msra.mxu0 0
        %299 = vmatprep.subr.bf16.mxu0 0
        %300 = vmatpush1.bf16.msra.mxu0 0
        %301 = vmatprep.subr.bf16.mxu0 0
        %302 = vmatpush1.bf16.msra.mxu0 0
        %303 = vmatprep.subr.bf16.mxu0 0
        %304 = vmatpush1.bf16.msra.mxu0 0
        %305 = vmatprep.subr.bf16.mxu0 0
        %306 = vmatpush1.bf16.msra.mxu0 0
        %307 = vmatprep.subr.bf16.mxu0 0
        %308 = vmatpush1.bf16.msra.mxu0 0
        %309 = vmatprep.subr.bf16.mxu0 0
        %310 = vmatpush1.bf16.msra.mxu0 0
        %311 = vmatprep.subr.bf16.mxu0 0
        %312 = vmatpush1.bf16.msra.mxu0 0
        %313 = vmatprep.subr.bf16.mxu0 0
        %314 = vmatpush1.bf16.msra.mxu0 0
        %315 = vmatprep.subr.bf16.mxu0 0
        %316 = vmatpush1.bf16.msra.mxu0 0
        %317 = vmatprep.subr.bf16.mxu0 0
        %318 = vmatpush1.bf16.msra.mxu0 0
        %319 = vmatprep.mubr.bf16.mxu0 0
        %320 = vmatmul.mubr.bf16.gmra.mrb[0].mxu0 %v282
        %v321 = vpop.f32.mrb[0].mxu0
        %v322 = vadd.f32 0.0, %v321
        %v323 = vpop.f32.mrb[0].mxu0
        %v324 = vadd.f32 0.0, %v323
        %v325 = vpop.f32.mrb[0].mxu0
        %v326 = vadd.f32 0.0, %v325
        %v327 = vpop.f32.mrb[0].mxu0
        %v328 = vadd.f32 0.0, %v327
        %329 = vmatprep.mubr.bf16.mxu0 0
        %330 = vmatmul.mubr.bf16.gmra.mrb[0].mxu0 %v285
        %v331 = vpop.f32.mrb[0].mxu0
        %v332 = vadd.f32 0.0, %v331
        %v333 = vpop.f32.mrb[0].mxu0
        %v334 = vadd.f32 0.0, %v333
        %v335 = vpop.f32.mrb[0].mxu0
        %v336 = vpop.f32.mrb[0].mxu0
        %337 = vdwg.mxu0
        %s338 = sld [smem:[#allocation2]]
        %s339 = sld [smem:[#allocation2 + $0x1]]
        %s340 = sld [smem:[#allocation2 + $0x2]]
        %s341 = sld [smem:[#allocation2 + $0x3]]
        %s342 = sld [smem:[#allocation2 + $0x4]]
        %s343 = sld [smem:[#allocation2 + $0x5]]
        %s344 = sld [smem:[#allocation2 + $0x6]]
        %s345 = sld [smem:[#allocation2 + $0x7]]
        %s346 = sld [smem:[#allocation2 + $0x8]]
        %s347 = sld [smem:[#allocation2 + $0x9]]
        %s348 = sld [smem:[#allocation2 + $0xa]]
        %s349 = sld [smem:[#allocation2 + $0xb]]
        %s350 = sld [smem:[#allocation2 + $0xc]]
        %s351 = sld [smem:[#allocation2 + $0xd]]
        %s352 = sld [smem:[#allocation2 + $0xe]]
        %s353 = sld [smem:[#allocation2 + $0xf]]
        %s354 = sld [smem:[#allocation2 + $0x10]]
        %s355 = sld [smem:[#allocation2 + $0x11]]
        %s356 = sld [smem:[#allocation2 + $0x12]]
        %v357 = vstv %s338
        %v358 = vadd.f32 %v357, 0.0
        %v361 = vrot.slane %v322, 7
        %v362 = vrot.slane %v324, 7
        %vm365 = vcmp.gt.f32.partialorder %v322, %v361
        %vm366 = vcmp.gt.f32.partialorder %v324, %v362
        %v367 = vstv %s339
        %v368 = vsel %vm365, %v367, %v358
        %v369 = vsel %vm366, %v367, %v358
        %v370 = vsel %vm365, %v322, %v361
        %v371 = vsel %vm366, %v324, %v362
        %v374 = vrot.slane %v370, 7
        %v375 = vrot.slane %v371, 7
        %vm378 = vcmp.gt.f32.partialorder %v322, %v374
        %vm379 = vcmp.gt.f32.partialorder %v324, %v375
        %v380 = vstv %s340
        %v383 = vrot.slane %v368, 7
        %v384 = vrot.slane %v369, 7
        %v387 = vsel %vm378, %v380, %v383
        %v388 = vsel %vm379, %v380, %v384
        %v389 = vsel %vm378, %v322, %v374
        %v390 = vsel %vm379, %v324, %v375
        %v393 = vrot.slane %v389, 7
        %v394 = vrot.slane %v390, 7
        %vm397 = vcmp.gt.f32.partialorder %v322, %v393
        %vm398 = vcmp.gt.f32.partialorder %v324, %v394
        %v399 = vstv %s341
        %v402 = vrot.slane %v387, 7
        %v403 = vrot.slane %v388, 7
        %v406 = vsel %vm397, %v399, %v402
        %v407 = vsel %vm398, %v399, %v403
        %v408 = vsel %vm397, %v322, %v393
        %v409 = vsel %vm398, %v324, %v394
        %v410 = vstv %s342
        %v411 = vadd.f32 %v410, 0.0
        %v412 = vstv %s343
        %v413 = vsel %vm365, %v412, %v411
        %v414 = vsel %vm366, %v412, %v411
        %v415 = vstv %s344
        %v418 = vrot.slane %v413, 7
        %v419 = vrot.slane %v414, 7
        %v422 = vsel %vm378, %v415, %v418
        %v423 = vsel %vm379, %v415, %v419
        %v424 = vstv %s345
        %v427 = vrot.slane %v422, 7
        %v428 = vrot.slane %v423, 7
        %v431 = vsel %vm397, %v424, %v427
        %v432 = vsel %vm398, %v424, %v428
        %v435 = vrot.slane %v408, 7
        %v436 = vrot.slane %v409, 7
        %vm439 = vcmp.gt.f32.partialorder %v326, %v435
        %vm440 = vcmp.gt.f32.partialorder %v328, %v436
        %v441 = vstv %s346
        %v444 = vrot.slane %v431, 7
        %v445 = vrot.slane %v432, 7
        %v448 = vsel %vm439, %v441, %v444
        %v449 = vsel %vm440, %v441, %v445
        %v450 = vsel %vm439, %v326, %v435
        %v451 = vsel %vm440, %v328, %v436
        %v452 = vstv %s347
        %v453 = vadd.f32 %v452, 0.0
        %v456 = vrot.slane %v326, 7
        %v457 = vrot.slane %v328, 7
        %vm460 = vcmp.gt.f32.partialorder %v326, %v456
        %vm461 = vcmp.gt.f32.partialorder %v328, %v457
        %v462 = vstv %s348
        %v463 = vsel %vm460, %v462, %v453
        %v464 = vsel %vm461, %v462, %v453
        %v465 = vsel %vm460, %v326, %v456
        %v466 = vsel %vm461, %v328, %v457
        %v469 = vrot.slane %v465, 7
        %v470 = vrot.slane %v466, 7
        %vm473 = vcmp.gt.f32.partialorder %v326, %v469
        %vm474 = vcmp.gt.f32.partialorder %v328, %v470
        %v475 = vstv %s349
        %v478 = vrot.slane %v463, 7
        %v479 = vrot.slane %v464, 7
        %v482 = vsel %vm473, %v475, %v478
        %v483 = vsel %vm474, %v475, %v479
        %v484 = vsel %vm473, %v326, %v469
        %v485 = vsel %vm474, %v328, %v470
        %v488 = vrot.slane %v484, 7
        %v489 = vrot.slane %v485, 7
        %vm492 = vcmp.gt.f32.partialorder %v326, %v488
        %vm493 = vcmp.gt.f32.partialorder %v328, %v489
        %v494 = vstv %s350
        %v497 = vrot.slane %v482, 7
        %v498 = vrot.slane %v483, 7
        %v501 = vsel %vm492, %v494, %v497
        %v502 = vsel %vm493, %v494, %v498
        %v503 = vsel %vm492, %v326, %v488
        %v504 = vsel %vm493, %v328, %v489
        %v507 = vrot.slane %v503, 7
        %v508 = vrot.slane %v504, 7
        %vm511 = vcmp.gt.f32.partialorder %v326, %v507
        %vm512 = vcmp.gt.f32.partialorder %v328, %v508
        %v513 = vstv %s351
        %v516 = vrot.slane %v501, 7
        %v517 = vrot.slane %v502, 7
        %v520 = vsel %vm511, %v513, %v516
        %v521 = vsel %vm512, %v513, %v517
        %v522 = vsel %vm511, %v326, %v507
        %v523 = vsel %vm512, %v328, %v508
        %v524 = vstv %s352
        %v525 = vadd.f32 %v524, 0.0
        %v526 = vstv %s353
        %v527 = vsel %vm460, %v526, %v525
        %v528 = vsel %vm461, %v526, %v525
        %vm529 = vcmp.gt.f32.partialorder %v332, %v469
        %vm530 = vcmp.gt.f32.partialorder %v334, %v470
        %v531 = vstv %s354
        %v534 = vrot.slane %v527, 7
        %v535 = vrot.slane %v528, 7
        %v538 = vsel %vm529, %v531, %v534
        %v539 = vsel %vm530, %v531, %v535
        %v540 = vsel %vm529, %v332, %v469
        %v541 = vsel %vm530, %v334, %v470
        %v544 = vrot.slane %v540, 7
        %v545 = vrot.slane %v541, 7
        %vm548 = vcmp.gt.f32.partialorder %v332, %v544
        %vm549 = vcmp.gt.f32.partialorder %v334, %v545
        %v550 = vstv %s355
        %v553 = vrot.slane %v538, 7
        %v554 = vrot.slane %v539, 7
        %v557 = vsel %vm548, %v550, %v553
        %v558 = vsel %vm549, %v550, %v554
        %v559 = vsel %vm548, %v332, %v544
        %v560 = vsel %vm549, %v334, %v545
        %v563 = vrot.slane %v559, 7
        %v564 = vrot.slane %v560, 7
        %vm567 = vcmp.gt.f32.partialorder %v332, %v563
        %vm568 = vcmp.gt.f32.partialorder %v334, %v564
        %v569 = vstv %s356
        %v572 = vrot.slane %v557, 7
        %v573 = vrot.slane %v558, 7
        %v576 = vsel %vm567, %v569, %v572
        %v577 = vsel %vm568, %v569, %v573
        %v578 = vsel %vm567, %v332, %v563
        %v579 = vsel %vm568, %v334, %v564
        %v580 = vrot.slane %v408, 3
        %v581 = vrot.slane %v409, 3
        %vm584 = vcmp.gt.f32.partialorder %v450, %v580
        %vm585 = vcmp.gt.f32.partialorder %v451, %v581
        %v588 = vrot.slane %v406, 3
        %v589 = vrot.slane %v407, 3
        %v592 = vsel %vm584, %v448, %v588
        %v593 = vsel %vm585, %v449, %v589
        %v594 = vsel %vm584, %v450, %v580
        %v595 = vsel %vm585, %v451, %v581
        %v598 = vrot.slane %v594, 3
        %v599 = vrot.slane %v595, 3
        %vm602 = vcmp.gt.f32.partialorder %v522, %v598
        %vm603 = vcmp.gt.f32.partialorder %v523, %v599
        %v606 = vrot.slane %v592, 3
        %v607 = vrot.slane %v593, 3
        %v610 = vsel %vm602, %v520, %v606
        %v611 = vsel %vm603, %v521, %v607
        %v612 = vsel %vm602, %v522, %v598
        %v613 = vsel %vm603, %v523, %v599
        %v616 = vrot.slane %v612, 3
        %v617 = vrot.slane %v613, 3
        %vm620 = vcmp.gt.f32.partialorder %v578, %v616
        %vm621 = vcmp.gt.f32.partialorder %v579, %v617
        %v624 = vrot.slane %v610, 3
        %v625 = vrot.slane %v611, 3
        %v628 = vsel %vm620, %v576, %v624
        %v629 = vsel %vm621, %v577, %v625
        %v630 = vld [vmem:[%s225] sm:$0x3]
        %v631 = vld [vmem:[%s225 + $0x2] sm:$0x3]
        %v632 = vld [vmem:[%s225 + $0x4] sm:$0x3]
        %v636 = vlaneseq
        %v637 = vshrl.u32 %v636, 7
        %v638 = vsub.s32 0, %v637
        %v639 = vrot.slane %v630, %v638
        %v640 = vlaneseq
        %v641 = vshrl.u32 %v640, 7
        %v642 = vsub.s32 1, %v641
        %v643 = vrot.slane %v630, %v642
        %v644 = vlaneseq
        %v645 = vshrl.u32 %v644, 7
        %v646 = vsub.s32 0, %v645
        %v647 = vrot.slane %v631, %v646
        %v648 = vlaneseq
        %v649 = vshrl.u32 %v648, 7
        %v650 = vsub.s32 1, %v649
        %v651 = vrot.slane %v631, %v650
        %v652 = vlaneseq
        %v653 = vshrl.u32 %v652, 7
        %v654 = vsub.s32 0, %v653
        %v655 = vrot.slane %v632, %v654
        %v656 = vlaneseq
        %v657 = vshrl.u32 %v656, 7
        %v658 = vsub.s32 1, %v657
        %v659 = vrot.slane %v632, %v658
        %vm666 = vcmask 1040384
        %v667 = vsel %vm666, %v639, 0.0
        %v668 = vsel %vm666, %v647, 0.0
        %v669 = vadd.f32 %v667, %v668
        %v670 = vsel %vm666, %v655, 0.0
        %v671 = vadd.f32 %v669, %v670
        %v672 = vsel %vm666, %v643, 0.0
        %v673 = vsel %vm666, %v651, 0.0
        %v674 = vadd.f32 %v672, %v673
        %v675 = vsel %vm666, %v659, 0.0
        %v676 = vadd.f32 %v674, %v675
        %v677 = vmul.f32 %v671, 0.33333334
        %v678 = vmul.f32 %v676, 0.33333334
        %v681 = vrot.slane %v628, 2
        %v682 = vrot.slane %v629, 2
        %v685 = vsub.f32 %v677, %v681
        %v686 = vsub.f32 %v678, %v682
        %v687 = vmul.f32 %v685, %v685
        %v688 = vmul.f32 %v686, %v686
        %v689 = vsel %vm666, %v687, 0.0
        %v690 = vsel %vm666, %v688, 0.0
        %v691 = vadd.f32 %v689, %v690
        %692 = vadd.xlane.f32.xlu0 %v691
        %v693 = vpop.xlane.xlu0 %692
        %v694 = vrot.slane %v693, 4
        %v695 = vadd.f32 %v693, %v694
        %v696 = vrot.slane %v695, 2
        %v697 = vadd.f32 %v695, %v696
        %v698 = vrot.slane %v697, 1
        %v699 = vadd.f32 %v697, %v698
        %s700 = vtos %v699
        %v701 = vstv %s700
        %702 = vst [vmem:[%s216] sm:$0x1] %v701
        %s703 = sand.u32 %s121, 1
        %s704 = scalar_lea.sflag [#allocation3], %s703
        %s705 = sand.u32 %s121, 1
        %s706 = scalar_lea.vmem [#allocation5], %s705
        // Predicated region
        $region41: #{tpu_custom_call.1} parent=35 // pred_check
          %p707 = pneg %p131
        $region42: #{tpu_custom_call.1} parent=35 // pred_check_branch
          %709 = sbr.rel (%p707) target = $region44
        $region43: #{tpu_custom_call.1} parent=35 // pred_region
          %s711 = ssub.s32 16, 16
          %712 = vsyncadd %s704, %s711
          %s713 = smul.addr %s19, 16
          %s714 = scalar_lea.hbm %s4, %s713
          %s716 = sshll.u32 %s706, 4
          %s717 = int_to_ptr.vmem [resolvable:$true] %s716
          %719 = dma.vmem_to_hbm [thread:$0]  %s717, 16, %s714, %s704
        $region44: #{tpu_custom_call.1} parent=35 // pred_fallthru
          _
      $region36: #{tpu_custom_call.1} parent=5 // pred_fallthru
        _
      %p720 = scmp.le.s32.totalorder 2, %s14
      // Predicated region
      $region45: #{tpu_custom_call.1} parent=5 // pred_check
        %p721 = pneg %p720
      $region46: #{tpu_custom_call.1} parent=5 // pred_check_branch
        %723 = sbr.rel (%p721) target = $region48
      $region47: #{tpu_custom_call.1} parent=5 // pred_region
        %s724 = ssub.s32 %s14, 2
        // Predicated region
        $region49: #{tpu_custom_call.1} parent=47 // pred_check
          %p725 = pneg %p137
        $region50: #{tpu_custom_call.1} parent=47 // pred_check_branch
          %727 = sbr.rel (%p725) target = $region52
        $region51: #{tpu_custom_call.1} parent=47 // pred_region
          %s728 = sand.u32 %s122, 1
          %s729 = scalar_lea.sflag [#allocation3], %s728
          %s730 = sand.u32 %s122, 1
          %s731 = scalar_lea.vmem [#allocation5], %s730
          %732 = dma.done %s729, 16
        $region52: #{tpu_custom_call.1} parent=47 // pred_fallthru
          _
      $region48: #{tpu_custom_call.1} parent=5 // pred_fallthru
        _
    $region6: #{tpu_custom_call.1} parent=1 // loop_footer
      %s18 = sadd.s32 1, %s14
    $region7: #{tpu_custom_call.1} parent=1 // loop_footer_branch
      %13 = sbr.rel target = $region3
    $region8: #{tpu_custom_call.1} parent=1 // loop_exit
      _
    %733 = vsyncpa [#allocation3], 1
    %s734 = scalar_lea.sflag [#allocation3], 1
    %735 = vsyncpa %s734, 1
    %736 = vsyncpa [#allocation4], 1
    %s737 = scalar_lea.sflag [#allocation4], 1
    %738 = vsyncpa %s737, 1

</llo_original>
